<compile_context>
chip_gen: v5e
topology: v5e:2x2
jax: 0.10.0
libtpu: 0.0.40
codegen_flags: <defaults>
</compile_context>

<pallas_src>
import functools

import jax
import jax.numpy as jnp
from jax.experimental import pallas as pl
from jax.experimental.pallas import tpu as pltpu

_LANES = 128
_SUBLANES = 8
_MAX_TILE_ROWS = 4096   # hard cap: 4096x128 f32 = 2 MiB per channel slab


def _tile_partials(x_ref, lab_ref, out_ref, *, n_chan, t_rows, mask):
    """Reduce one (C, t_rows, 128) logits tile + labels tile to (4, 8, 128)."""
    f32 = jnp.float32
    lab = lab_ref[...].astype(f32)                       # (t_rows, 128)
    x1 = x_ref[1].astype(f32)                            # softmax channel 1

    # p1 = softmax(x)[1] = 1 / (1 + sum_{c != 1} exp(x_c - x_1)).
    denom = jnp.ones_like(x1)                            # exp(x_1 - x_1)
    for c in range(n_chan):
        if c == 1:
            continue
        d = x_ref[c].astype(f32) - x1                    # lazy per-channel read
        if mask is not None:
            d = jnp.where(mask, d, 0.0)                  # kill garbage pre-exp
        denom = denom + jnp.exp(d)
    p1 = 1.0 / denom                                     # finite everywhere

    def _red(v):  # (t_rows, 128) -> (8, 128): vreg-wise adds (VPU only)
        return jnp.sum(v.reshape(t_rows // _SUBLANES, _SUBLANES, _LANES),
                       axis=0)

    if mask is None:
        out_ref[0] = _red((lab == 1.0).astype(f32))
        out_ref[1] = _red((lab == 0.0).astype(f32))
        out_ref[2] = _red(lab * jnp.maximum(3.5 - p1, 0.0))
        out_ref[3] = _red((1.0 - lab) * p1)
    else:
        vz = jnp.zeros_like(lab)
        out_ref[0] = _red(jnp.where(mask, (lab == 1.0).astype(f32), vz))
        out_ref[1] = _red(jnp.where(mask, (lab == 0.0).astype(f32), vz))
        out_ref[2] = _red(jnp.where(mask, lab, vz) * jnp.maximum(3.5 - p1, 0.0))
        out_ref[3] = _red(jnp.where(mask, 1.0 - lab, vz) * p1)


def _entropy_loss_kernel(x_ref, lab_ref, out_ref, *, hw, t_rows, n_chan,
                         num_r, needs_mask):
    """Grid = (N, num_spatial_tiles); every step writes its own partial block.

    x_ref:   (C, t_rows, 128)  logits tile (native dtype, batch dim squeezed)
    lab_ref: (t_rows, 128)     labels tile (native dtype)
    out_ref: (4, 8, 128) f32   per-tile partials [n(==1), n(==0), sum1, sum2]
    """
    body = functools.partial(_tile_partials, x_ref, lab_ref, out_ref,
                             n_chan=n_chan, t_rows=t_rows)

    if not needs_mask:          # compile-time: whole extent is valid
        body(mask=None)
        return

    r = pl.program_id(1)

    def _tail_mask():
        row = jax.lax.broadcasted_iota(jnp.int32, (t_rows, _LANES), 0)
        lane = jax.lax.broadcasted_iota(jnp.int32, (t_rows, _LANES), 1)
        pos = (r * t_rows + row) * _LANES + lane
        return pos < hw

    if num_r == 1:
        body(mask=_tail_mask())
    else:
        # Mask work only on the last tile; interior tiles stay mask-free.
        @pl.when(r < num_r - 1)
        def _steady():
            body(mask=None)

        @pl.when(r == num_r - 1)
        def _tail():
            body(mask=_tail_mask())


def my_entropy_loss(outputs, labels, *, max_tile_rows=None):
    """outputs: (N, C, H, W) logits; labels: (N, 1, H, W) (or (N, H, W))."""
    N, C, H, W = outputs.shape
    assert C >= 2, "loss takes softmax channel 1"
    hw = H * W
    assert labels.size == N * hw, "labels must have one value per pixel"

    x_bytes = jnp.dtype(outputs.dtype).itemsize
    l_bytes = jnp.dtype(labels.dtype).itemsize

    # ---- tile sizing against the real VMEM budget (v7x has only 64 MiB) ----
    try:
        vmem_cap = int(pltpu.get_tpu_info().vmem_capacity_bytes)
    except Exception:                                    # interpret mode / CPU
        vmem_cap = 64 * 1024 * 1024                      # conservative (v7x)
    budget = min(vmem_cap // 2, 40 << 20) - (2 << 20)
    # 2 pipeline buffers x (C logit slabs + 1 label slab) + ~8 f32 temps/row.
    per_row = 2 * _LANES * (C * x_bytes + l_bytes) + 8 * _LANES * 4
    cap_rows = max(_SUBLANES,
                   min(_MAX_TILE_ROWS, (budget // per_row) // 32 * 32))
    if max_tile_rows is not None:                        # test-only hook
        cap_rows = max(_SUBLANES, min(cap_rows, (max_tile_rows // 8) * 8))

    # ---- zero-copy (8,128) view of the flattened spatial axis --------------
    hw_pad = -(-hw // (_SUBLANES * _LANES)) * (_SUBLANES * _LANES)
    rows = hw_pad // _LANES                              # multiple of 8
    x = outputs.reshape(N, C, hw)
    lab = labels.reshape(N, hw)
    if hw_pad != hw:  # only when H*W is not (8,128)-aligned; tail is masked
        x = jnp.pad(x, ((0, 0), (0, 0), (0, hw_pad - hw)))
        lab = jnp.pad(lab, ((0, 0), (0, hw_pad - hw)))
    x = x.reshape(N, C, rows, _LANES)
    lab = lab.reshape(N, rows, _LANES)

    if rows <= cap_rows:
        t_rows, num_r = rows, 1
    else:
        t_rows = cap_rows
        num_r = -(-rows // t_rows)                       # ragged tail allowed
    needs_mask = (num_r * t_rows * _LANES != hw)

    kernel = functools.partial(_entropy_loss_kernel, hw=hw, t_rows=t_rows,
                               n_chan=C, num_r=num_r, needs_mask=needs_mask)

    vmem_limit = min(int(vmem_cap * 3 // 4),
                     max(16 << 20, per_row * t_rows + (8 << 20)))

    partials = pl.pallas_call(
        kernel,
        out_shape=jax.ShapeDtypeStruct((N, num_r, 4, _SUBLANES, _LANES),
                                       jnp.float32),
        grid_spec=pltpu.PrefetchScalarGridSpec(
            num_scalar_prefetch=0,
            grid=(N, num_r),
            in_specs=[
                pl.BlockSpec((None, C, t_rows, _LANES),
                             lambda n, r: (n, 0, r, 0)),
                pl.BlockSpec((None, t_rows, _LANES),
                             lambda n, r: (n, r, 0)),
            ],
            out_specs=pl.BlockSpec((None, None, 4, _SUBLANES, _LANES),
                                   lambda n, r: (n, r, 0, 0, 0)),
        ),
        compiler_params=pltpu.CompilerParams(
            dimension_semantics=("parallel", "parallel"),
            vmem_limit_bytes=int(vmem_limit),
        ),
        cost_estimate=pl.CostEstimate(
            flops=int(N * num_r * t_rows * _LANES * (3 * C + 12)),
            transcendentals=int(N * num_r * t_rows * _LANES * (C - 1)),
            bytes_accessed=int(N * num_r * (t_rows * _LANES *
                                            (C * x_bytes + l_bytes)
                                            + 4 * _SUBLANES * _LANES * 4)),
        ),
    )(x, lab)

    # O(1) scalar epilogue: combine partials and apply the PyTorch guards
    # (`if nc != 0` / `if nu != 0` become branchless selects).
    sums = jnp.sum(partials, axis=(0, 1, 3, 4))          # [nc, nu, s1, s2]
    nc, nu, s1, s2 = sums[0], sums[1], sums[2], sums[3]
    loss1 = jnp.where(nc != 0.0, s1 / jnp.where(nc != 0.0, nc, 1.0), 0.0)
    loss2 = jnp.where(nu != 0.0, s2 / jnp.where(nu != 0.0, nu, 1.0), 0.0)
    return loss1 + loss2


def _reference_loss(outputs, labels):
    """Pure-JAX reference mirroring the PyTorch module (for verification)."""
    p = jax.nn.softmax(outputs.astype(jnp.float32), axis=1)[:, 1:2, :, :]
    lab = labels.astype(jnp.float32).reshape(p.shape)
    nc = jnp.sum((lab == 1.0).astype(jnp.float32))
    nu = jnp.sum((lab == 0.0).astype(jnp.float32))
    s1 = jnp.sum(lab * jnp.maximum(3.5 - p, 0.0))
    s2 = jnp.sum((1.0 - lab) * p)
    l1 = jnp.where(nc != 0.0, s1 / jnp.where(nc != 0.0, nc, 1.0), 0.0)
    l2 = jnp.where(nu != 0.0, s2 / jnp.where(nu != 0.0, nu, 1.0), 0.0)
    return l1 + l2


if __name__ == "__main__":
    key = jax.random.PRNGKey(0)
    k1, k2 = jax.random.split(key)
    # small shapes consistent with the forward: batch=2, channels=4, 16x16
    outputs = jax.random.normal(k1, (2, 4, 16, 16), dtype=jnp.float32)
    labels = jax.random.bernoulli(k2, 0.3, (2, 1, 16, 16)).astype(jnp.float32)

    loss = my_entropy_loss(outputs, labels)
    jax.block_until_ready(loss)
    ref = _reference_loss(outputs, labels)
    assert jnp.allclose(loss, ref, rtol=1e-5, atol=1e-5), (loss, ref)

    # Extra coverage: ragged H*W (masked tail, odd channel count).
    k3, k4 = jax.random.split(k2)
    o2 = jax.random.normal(k3, (1, 3, 20, 20), dtype=jnp.float32)
    l2 = jax.random.bernoulli(k4, 0.5, (1, 1, 20, 20)).astype(jnp.float32)
    r2 = my_entropy_loss(o2, l2)
    jax.block_until_ready(r2)
    assert jnp.allclose(r2, _reference_loss(o2, l2), rtol=1e-5, atol=1e-5)

    # Extra coverage: multi-tile grid with a partial (masked) last block,
    # forced via the test-only tile cap.
    k5, k6 = jax.random.split(k4)
    o3 = jax.random.normal(k5, (2, 4, 64, 80), dtype=jnp.float32)
    l3 = jax.random.bernoulli(k6, 0.3, (2, 1, 64, 80)).astype(jnp.float32)
    r3 = my_entropy_loss(o3, l3, max_tile_rows=16)
    jax.block_until_ready(r3)
    assert jnp.allclose(r3, _reference_loss(o3, l3), rtol=1e-5, atol=1e-5)

    print("KERNEL_OK")
</pallas_src>

<mosaic_0001>
module attributes {stable_mosaic.version = 11 : i64} {
  func.func @_entropy_loss_kernel(%arg0: i32, %arg1: i32, %arg2: memref<1x4x8x128xf32, #tpu.memory_space<vmem>>, %arg3: memref<1x8x128xf32, #tpu.memory_space<vmem>>, %arg4: memref<1x1x4x8x128xf32, #tpu.memory_space<vmem>>) attributes {dimension_semantics = [#tpu.dimension_semantics<parallel>, #tpu.dimension_semantics<parallel>], iteration_bounds = array<i64: 2, 1>, scalar_prefetch = 0 : i64, scratch_operands = 0 : i64, tpu.core_type = #tpu.core_type<tc>, window_params = [{transform_indices = @transform_0, window_bounds = array<i64: 1, 4, 8, 128>}, {transform_indices = @transform_1, window_bounds = array<i64: 1, 8, 128>}, {transform_indices = @transform_2, window_bounds = array<i64: 1, 1, 4, 8, 128>}]} {
    %0 = tpu.iota {dimensions = array<i32: 0>} : vector<8x128xi32>
    %1 = tpu.iota {dimensions = array<i32: 1>} : vector<8x128xi32>
    %c8_i32 = arith.constant 8 : i32
    %2 = arith.muli %arg1, %c8_i32 : i32
    %3 = vector.broadcast %2 : i32 to vector<8x128xi32>
    %4 = arith.addi %3, %0 : vector<8x128xi32>
    %c128_i32 = arith.constant 128 : i32
    %5 = vector.broadcast %c128_i32 : i32 to vector<8x128xi32>
    %6 = arith.muli %4, %5 : vector<8x128xi32>
    %7 = arith.addi %6, %1 : vector<8x128xi32>
    %c256_i32 = arith.constant 256 : i32
    %8 = vector.broadcast %c256_i32 : i32 to vector<8x128xi32>
    %9 = arith.cmpi slt, %7, %8 : vector<8x128xi32>
    %c0 = arith.constant 0 : index
    %c0_0 = arith.constant 0 : index
    %c0_1 = arith.constant 0 : index
    %10 = vector.load %arg3[%c0, %c0_0, %c0_1] : memref<1x8x128xf32, #tpu.memory_space<vmem>>, vector<1x8x128xf32>
    %11 = vector.shape_cast %10 : vector<1x8x128xf32> to vector<8x128xf32>
    %c0_2 = arith.constant 0 : index
    %c1 = arith.constant 1 : index
    %c0_3 = arith.constant 0 : index
    %c0_4 = arith.constant 0 : index
    %12 = vector.load %arg2[%c0_2, %c1, %c0_3, %c0_4] : memref<1x4x8x128xf32, #tpu.memory_space<vmem>>, vector<1x1x8x128xf32>
    %13 = vector.shape_cast %12 : vector<1x1x8x128xf32> to vector<8x128xf32>
    %cst = arith.constant 1.000000e+00 : f32
    %14 = vector.broadcast %cst : f32 to vector<8x128xf32>
    %c0_5 = arith.constant 0 : index
    %c0_6 = arith.constant 0 : index
    %c0_7 = arith.constant 0 : index
    %c0_8 = arith.constant 0 : index
    %15 = vector.load %arg2[%c0_5, %c0_6, %c0_7, %c0_8] : memref<1x4x8x128xf32, #tpu.memory_space<vmem>>, vector<1x1x8x128xf32>
    %16 = vector.shape_cast %15 : vector<1x1x8x128xf32> to vector<8x128xf32>
    %17 = arith.subf %16, %13 : vector<8x128xf32>
    %cst_9 = arith.constant 0.000000e+00 : f32
    %18 = vector.broadcast %cst_9 : f32 to vector<8x128xf32>
    %19 = arith.select %9, %17, %18 : vector<8x128xi1>, vector<8x128xf32>
    %20 = math.exp %19 : vector<8x128xf32>
    %21 = arith.addf %14, %20 : vector<8x128xf32>
    %c0_10 = arith.constant 0 : index
    %c2 = arith.constant 2 : index
    %c0_11 = arith.constant 0 : index
    %c0_12 = arith.constant 0 : index
    %22 = vector.load %arg2[%c0_10, %c2, %c0_11, %c0_12] : memref<1x4x8x128xf32, #tpu.memory_space<vmem>>, vector<1x1x8x128xf32>
    %23 = vector.shape_cast %22 : vector<1x1x8x128xf32> to vector<8x128xf32>
    %24 = arith.subf %23, %13 : vector<8x128xf32>
    %cst_13 = arith.constant 0.000000e+00 : f32
    %25 = vector.broadcast %cst_13 : f32 to vector<8x128xf32>
    %26 = arith.select %9, %24, %25 : vector<8x128xi1>, vector<8x128xf32>
    %27 = math.exp %26 : vector<8x128xf32>
    %28 = arith.addf %21, %27 : vector<8x128xf32>
    %c0_14 = arith.constant 0 : index
    %c3 = arith.constant 3 : index
    %c0_15 = arith.constant 0 : index
    %c0_16 = arith.constant 0 : index
    %29 = vector.load %arg2[%c0_14, %c3, %c0_15, %c0_16] : memref<1x4x8x128xf32, #tpu.memory_space<vmem>>, vector<1x1x8x128xf32>
    %30 = vector.shape_cast %29 : vector<1x1x8x128xf32> to vector<8x128xf32>
    %31 = arith.subf %30, %13 : vector<8x128xf32>
    %cst_17 = arith.constant 0.000000e+00 : f32
    %32 = vector.broadcast %cst_17 : f32 to vector<8x128xf32>
    %33 = arith.select %9, %31, %32 : vector<8x128xi1>, vector<8x128xf32>
    %34 = math.exp %33 : vector<8x128xf32>
    %35 = arith.addf %28, %34 : vector<8x128xf32>
    %cst_18 = arith.constant 1.000000e+00 : f32
    %36 = vector.broadcast %cst_18 : f32 to vector<8x128xf32>
    %37 = arith.divf %36, %35 : vector<8x128xf32>
    %cst_19 = arith.constant 0.000000e+00 : f32
    %38 = vector.broadcast %cst_19 : f32 to vector<8x128xf32>
    %cst_20 = arith.constant 1.000000e+00 : f32
    %39 = vector.broadcast %cst_20 : f32 to vector<8x128xf32>
    %40 = arith.cmpf oeq, %11, %39 : vector<8x128xf32>
    %41 = arith.extui %40 : vector<8x128xi1> to vector<8x128xi32>
    %42 = arith.sitofp %41 : vector<8x128xi32> to vector<8x128xf32>
    %43 = arith.select %9, %42, %38 : vector<8x128xi1>, vector<8x128xf32>
    %44 = vector.shape_cast %43 : vector<8x128xf32> to vector<1x8x128xf32>
    %cst_21 = arith.constant dense<0.000000e+00> : vector<8x128xf32>
    %45 = vector.multi_reduction <add>, %44, %cst_21 [0] : vector<1x8x128xf32> to vector<8x128xf32>
    %c0_22 = arith.constant 0 : index
    %c0_23 = arith.constant 0 : index
    %c0_24 = arith.constant 0 : index
    %c0_25 = arith.constant 0 : index
    %c0_26 = arith.constant 0 : index
    %46 = vector.load %arg4[%c0_22, %c0_23, %c0_24, %c0_25, %c0_26] : memref<1x1x4x8x128xf32, #tpu.memory_space<vmem>>, vector<1x1x1x8x128xf32>
    %47 = vector.shape_cast %46 : vector<1x1x1x8x128xf32> to vector<8x128xf32>
    %48 = vector.shape_cast %45 : vector<8x128xf32> to vector<1x1x1x8x128xf32>
    tpu.vector_store %arg4[%c0_22, %c0_23, %c0_24, %c0_25, %c0_26], %48 {strides = array<i32>} : memref<1x1x4x8x128xf32, #tpu.memory_space<vmem>>, vector<1x1x1x8x128xf32>,
    %cst_27 = arith.constant 0.000000e+00 : f32
    %49 = vector.broadcast %cst_27 : f32 to vector<8x128xf32>
    %50 = arith.cmpf oeq, %11, %49 : vector<8x128xf32>
    %51 = arith.extui %50 : vector<8x128xi1> to vector<8x128xi32>
    %52 = arith.sitofp %51 : vector<8x128xi32> to vector<8x128xf32>
    %53 = arith.select %9, %52, %38 : vector<8x128xi1>, vector<8x128xf32>
    %54 = vector.shape_cast %53 : vector<8x128xf32> to vector<1x8x128xf32>
    %cst_28 = arith.constant dense<0.000000e+00> : vector<8x128xf32>
    %55 = vector.multi_reduction <add>, %54, %cst_28 [0] : vector<1x8x128xf32> to vector<8x128xf32>
    %c0_29 = arith.constant 0 : index
    %c0_30 = arith.constant 0 : index
    %c1_31 = arith.constant 1 : index
    %c0_32 = arith.constant 0 : index
    %c0_33 = arith.constant 0 : index
    %56 = vector.load %arg4[%c0_29, %c0_30, %c1_31, %c0_32, %c0_33] : memref<1x1x4x8x128xf32, #tpu.memory_space<vmem>>, vector<1x1x1x8x128xf32>
    %57 = vector.shape_cast %56 : vector<1x1x1x8x128xf32> to vector<8x128xf32>
    %58 = vector.shape_cast %55 : vector<8x128xf32> to vector<1x1x1x8x128xf32>
    tpu.vector_store %arg4[%c0_29, %c0_30, %c1_31, %c0_32, %c0_33], %58 {strides = array<i32>} : memref<1x1x4x8x128xf32, #tpu.memory_space<vmem>>, vector<1x1x1x8x128xf32>,
    %59 = arith.select %9, %11, %38 : vector<8x128xi1>, vector<8x128xf32>
    %cst_34 = arith.constant 3.500000e+00 : f32
    %60 = vector.broadcast %cst_34 : f32 to vector<8x128xf32>
    %61 = arith.subf %60, %37 : vector<8x128xf32>
    %cst_35 = arith.constant 0.000000e+00 : f32
    %62 = vector.broadcast %cst_35 : f32 to vector<8x128xf32>
    %63 = arith.maximumf %61, %62 : vector<8x128xf32>
    %64 = arith.mulf %59, %63 : vector<8x128xf32>
    %65 = vector.shape_cast %64 : vector<8x128xf32> to vector<1x8x128xf32>
    %cst_36 = arith.constant dense<0.000000e+00> : vector<8x128xf32>
    %66 = vector.multi_reduction <add>, %65, %cst_36 [0] : vector<1x8x128xf32> to vector<8x128xf32>
    %c0_37 = arith.constant 0 : index
    %c0_38 = arith.constant 0 : index
    %c2_39 = arith.constant 2 : index
    %c0_40 = arith.constant 0 : index
    %c0_41 = arith.constant 0 : index
    %67 = vector.load %arg4[%c0_37, %c0_38, %c2_39, %c0_40, %c0_41] : memref<1x1x4x8x128xf32, #tpu.memory_space<vmem>>, vector<1x1x1x8x128xf32>
    %68 = vector.shape_cast %67 : vector<1x1x1x8x128xf32> to vector<8x128xf32>
    %69 = vector.shape_cast %66 : vector<8x128xf32> to vector<1x1x1x8x128xf32>
    tpu.vector_store %arg4[%c0_37, %c0_38, %c2_39, %c0_40, %c0_41], %69 {strides = array<i32>} : memref<1x1x4x8x128xf32, #tpu.memory_space<vmem>>, vector<1x1x1x8x128xf32>,
    %cst_42 = arith.constant 1.000000e+00 : f32
    %70 = vector.broadcast %cst_42 : f32 to vector<8x128xf32>
    %71 = arith.subf %70, %11 : vector<8x128xf32>
    %72 = arith.select %9, %71, %38 : vector<8x128xi1>, vector<8x128xf32>
    %73 = arith.mulf %72, %37 : vector<8x128xf32>
    %74 = vector.shape_cast %73 : vector<8x128xf32> to vector<1x8x128xf32>
    %cst_43 = arith.constant dense<0.000000e+00> : vector<8x128xf32>
    %75 = vector.multi_reduction <add>, %74, %cst_43 [0] : vector<1x8x128xf32> to vector<8x128xf32>
    %c0_44 = arith.constant 0 : index
    %c0_45 = arith.constant 0 : index
    %c3_46 = arith.constant 3 : index
    %c0_47 = arith.constant 0 : index
    %c0_48 = arith.constant 0 : index
    %76 = vector.load %arg4[%c0_44, %c0_45, %c3_46, %c0_47, %c0_48] : memref<1x1x4x8x128xf32, #tpu.memory_space<vmem>>, vector<1x1x1x8x128xf32>
    %77 = vector.shape_cast %76 : vector<1x1x1x8x128xf32> to vector<8x128xf32>
    %78 = vector.shape_cast %75 : vector<8x128xf32> to vector<1x1x1x8x128xf32>
    tpu.vector_store %arg4[%c0_44, %c0_45, %c3_46, %c0_47, %c0_48], %78 {strides = array<i32>} : memref<1x1x4x8x128xf32, #tpu.memory_space<vmem>>, vector<1x1x1x8x128xf32>,
    return
  }
  func.func @transform_0(%arg0: i32, %arg1: i32) -> (i32, i32, i32, i32) {
    %c0_i32 = arith.constant 0 : i32
    %c0_i32_0 = arith.constant 0 : i32
    %c0_i32_1 = arith.constant 0 : i32
    return %arg0, %c0_i32, %arg1, %c0_i32_0 : i32, i32, i32, i32
  }
  func.func @transform_1(%arg0: i32, %arg1: i32) -> (i32, i32, i32) {
    %c0_i32 = arith.constant 0 : i32
    %c0_i32_0 = arith.constant 0 : i32
    return %arg0, %arg1, %c0_i32 : i32, i32, i32
  }
  func.func @transform_2(%arg0: i32, %arg1: i32) -> (i32, i32, i32, i32, i32) {
    %c0_i32 = arith.constant 0 : i32
    %c0_i32_0 = arith.constant 0 : i32
    %c0_i32_1 = arith.constant 0 : i32
    %c0_i32_2 = arith.constant 0 : i32
    return %arg0, %arg1, %c0_i32, %c0_i32_0, %c0_i32_1 : i32, i32, i32, i32, i32
  }
}

</mosaic_0001>

<llo_original>
// kernel: tpu_custom_call.1
$region0: #{tpu_custom_call.1}
  #allocation0 [shape = 'u32[]', space=smem, size = 0x4, offset = 0x4, fixed_abs, tag = 'smem constant byte address 0x4 - core index']
  #allocation1 [shape = 'u32[72,128]{1,0:T(1,128)}', space=vmem, size = 0x9000, scoped, tag = 'internal scratch']
  %s0 = inlined_call_operand.hbm [shape: f32[2,4,8,128], index: 0, kind: input, shape index: {}]
  %s1 = inlined_call_operand.hbm [shape: f32[2,8,128], index: 1, kind: input, shape index: {}]
  %s2 = inlined_call_operand.hbm [shape: f32[2,1,4,8,128], index: 2, kind: output, shape index: {}]
  %s3 = sld [smem:[#allocation0]]
  $region49: #{tpu_custom_call.1} parent=0
    _
  %s5 = ssub.s32 1, %s3
  %s6 = scalar_select 0, %s5, %s3
  $region1: #{tpu_custom_call.1} parent=0
    #allocation2 [shape = 'u8[32768]{0}', space=vmem, size = 0x8000, scoped, tag = 'input window, operand 0']
    #allocation3 [shape = 's32[2]{0}', space=sflag, size = 0x8, scoped, tag = 'scoped memory for tpu_custom_call.1']
    #allocation4 [shape = 's32[2]{0}', space=sflag, size = 0x8, scoped, tag = 'scoped memory for tpu_custom_call.1']
    #allocation5 [shape = 'u8[8192]{0}', space=vmem, size = 0x2000, scoped, tag = 'input window, operand 1']
    #allocation6 [shape = 's32[2]{0}', space=sflag, size = 0x8, scoped, tag = 'scoped memory for tpu_custom_call.1']
    #allocation7 [shape = 'u8[32768]{0}', space=vmem, size = 0x8000, scoped, tag = 'output window, operand 0']
    %7 = vsyncpa [#allocation3], 0
    %s8 = scalar_lea.sflag [#allocation3], 1
    %9 = vsyncpa %s8, 0
    %10 = vsyncpa [#allocation6], 0
    %s11 = scalar_lea.sflag [#allocation6], 1
    %12 = vsyncpa %s11, 0
    %13 = vsyncpa [#allocation4], 0
    %s14 = scalar_lea.sflag [#allocation4], 1
    %15 = vsyncpa %s14, 0
    loop: start=0, step=1, limit=4
    $region2: #{tpu_custom_call.1} parent=1 // loop_pre_header
      _
    $region3: #{tpu_custom_call.1} parent=1 // loop_header
      %s17 = sphi 0, %s21
      %p18 = scmp.ge.s32.totalorder %s17, 4
      %s24 = sphi 0, %s36
      %s25 = sphi 0, %s32
      %s26 = sphi 0, %s24
      %s27 = sphi 0, %s25
      %s28 = sphi 0, %s26
      %s29 = sphi 0, %s27
      %s41 = sphi 0, %s43
      %s44 = sphi 0, %s41
      %s45 = sphi 0, %s44
      %s61 = sphi 0, %s45
      %s69 = sphi 0, %s71
      %s72 = sphi 0, %s69
      %s73 = sphi 0, %s72
      %s89 = sphi 0, %s73
      %s97 = sphi 0, %s99
      %s100 = sphi 0, %s97
      %s101 = sphi 0, %s100
      %s117 = sphi 0, %s101
    $region4: #{tpu_custom_call.1} parent=1 // loop_header_branch
      %20 = sbr.rel (%p18) target = $region8
    $region5: #{tpu_custom_call.1} parent=1 // loop_body
      %s22 = ssub.s32 %s17, 1
      %s23 = ssub.s32 %s17, 2
      %s30 = sadd.s32 1, %s25
      %p31 = scmp.ge.s32.totalorder %s30, 1
      %s32 = scalar_select %p31, 0, %s30
      %s33 = sadd.s32 1, %s24
      %s34 = scalar_select %p31, %s33, %s24
      %p35 = scmp.ge.s32.totalorder %s34, 2
      %s36 = scalar_select %p35, 0, %s34
      %s37 = ssub.s32 %s24, %s36
      %s38 = ssub.s32 %s25, %s32
      %s39 = sor.u32 %s37, %s38
      %p40 = scmp.eq.s32.totalorder %s39, 0
      %s42 = sadd.s32 %s41, 1
      %s43 = scalar_select %p40, %s41, %s42
      %p46 = pneg %p40
      %p47 = scmp.eq.s32.totalorder %s17, 1
      %p48 = por %p46, %p47
      %p49 = scmp.ne.s32.totalorder %s41, %s44
      %p50 = scmp.eq.s32.totalorder %s17, 0
      %p51 = por %p49, %p50
      %p52 = scmp.ne.s32.totalorder %s41, %s44
      %p53 = scmp.eq.s32.totalorder %s22, 1
      %p54 = por %p52, %p53
      %p55 = scmp.ne.s32.totalorder %s44, %s45
      %p56 = scmp.eq.s32.totalorder %s22, 0
      %p57 = por %p55, %p56
      %p58 = scmp.ne.s32.totalorder %s44, %s45
      %p59 = scmp.eq.s32.totalorder %s23, 1
      %p60 = por %p58, %p59
      %p62 = scmp.ne.s32.totalorder %s45, %s61
      %p63 = scmp.eq.s32.totalorder %s23, 0
      %p64 = por %p62, %p63
      %s65 = ssub.s32 %s24, %s36
      %s66 = ssub.s32 %s25, %s32
      %s67 = sor.u32 %s65, %s66
      %p68 = scmp.eq.s32.totalorder %s67, 0
      %s70 = sadd.s32 %s69, 1
      %s71 = scalar_select %p68, %s69, %s70
      %p74 = pneg %p68
      %p75 = scmp.eq.s32.totalorder %s17, 1
      %p76 = por %p74, %p75
      %p77 = scmp.ne.s32.totalorder %s69, %s72
      %p78 = scmp.eq.s32.totalorder %s17, 0
      %p79 = por %p77, %p78
      %p80 = scmp.ne.s32.totalorder %s69, %s72
      %p81 = scmp.eq.s32.totalorder %s22, 1
      %p82 = por %p80, %p81
      %p83 = scmp.ne.s32.totalorder %s72, %s73
      %p84 = scmp.eq.s32.totalorder %s22, 0
      %p85 = por %p83, %p84
      %p86 = scmp.ne.s32.totalorder %s72, %s73
      %p87 = scmp.eq.s32.totalorder %s23, 1
      %p88 = por %p86, %p87
      %p90 = scmp.ne.s32.totalorder %s73, %s89
      %p91 = scmp.eq.s32.totalorder %s23, 0
      %p92 = por %p90, %p91
      %s93 = ssub.s32 %s24, %s36
      %s94 = ssub.s32 %s25, %s32
      %s95 = sor.u32 %s93, %s94
      %p96 = scmp.eq.s32.totalorder %s95, 0
      %s98 = sadd.s32 %s97, 1
      %s99 = scalar_select %p96, %s97, %s98
      %p102 = pneg %p96
      %p103 = scmp.eq.s32.totalorder %s17, 1
      %p104 = por %p102, %p103
      %p105 = scmp.ne.s32.totalorder %s97, %s100
      %p106 = scmp.eq.s32.totalorder %s17, 0
      %p107 = por %p105, %p106
      %p108 = scmp.ne.s32.totalorder %s97, %s100
      %p109 = scmp.eq.s32.totalorder %s22, 1
      %p110 = por %p108, %p109
      %p111 = scmp.ne.s32.totalorder %s100, %s101
      %p112 = scmp.eq.s32.totalorder %s22, 0
      %p113 = por %p111, %p112
      %p114 = scmp.ne.s32.totalorder %s100, %s101
      %p115 = scmp.eq.s32.totalorder %s23, 1
      %p116 = por %p114, %p115
      %p118 = scmp.ne.s32.totalorder %s101, %s117
      %p119 = scmp.eq.s32.totalorder %s23, 0
      %p120 = por %p118, %p119
      %p121 = scmp.le.s32.totalorder 1, %s17
      %p122 = scmp.lt.s32.totalorder %s17, 3
      %p123 = pnand %p121, %p122
      %p124 = pneg %p123
      // Predicated region
      $region9: #{tpu_custom_call.1} parent=5 // pred_check
        _
      $region10: #{tpu_custom_call.1} parent=5 // pred_check_branch
        %126 = sbr.rel (%p123) target = $region12
      $region11: #{tpu_custom_call.1} parent=5 // pred_region
        %s127 = ssub.s32 %s17, 1
      $region12: #{tpu_custom_call.1} parent=5 // pred_fallthru
        _
      %p128 = scmp.lt.s32.totalorder %s17, 2
      // Predicated region
      $region13: #{tpu_custom_call.1} parent=5 // pred_check
        %p129 = pneg %p128
      $region14: #{tpu_custom_call.1} parent=5 // pred_check_branch
        %131 = sbr.rel (%p129) target = $region16
      $region15: #{tpu_custom_call.1} parent=5 // pred_region
        // Predicated region
        $region17: #{tpu_custom_call.1} parent=15 // pred_check
          %p132 = pneg %p51
        $region18: #{tpu_custom_call.1} parent=15 // pred_check_branch
          %134 = sbr.rel (%p132) target = $region20
        $region19: #{tpu_custom_call.1} parent=15 // pred_region
          %s135 = sand.u32 %s41, 1
          %s136 = scalar_lea.sflag [#allocation3], %s135
          %s137 = sand.u32 %s41, 1
          %s138 = smul.addr %s137, 32
          %s139 = scalar_lea.vmem [#allocation2], %s138
          %141 = vsyncadd %s136, 0
          %s142 = smul.addr %s24, 4
          %s143 = sadd.s32 %s25, %s142
          %s144 = smul.addr %s143, 8
          %s145 = scalar_lea.hbm %s0, %s144
          %s146 = sshll.u32 %s145, 4
          %s147 = int_to_ptr.hbm [resolvable:$true] %s146
          %s148 = sshll.u32 %s139, 4
          %s149 = int_to_ptr.vmem [resolvable:$true] %s148
          %154 = dma.hbm_to_vmem [thread:$0]  %s147, 512, %s149, %s136, 128, 128, 8
        $region20: #{tpu_custom_call.1} parent=15 // pred_fallthru
          _
        // Predicated region
        $region21: #{tpu_custom_call.1} parent=15 // pred_check
          %p155 = pneg %p79
        $region22: #{tpu_custom_call.1} parent=15 // pred_check_branch
          %157 = sbr.rel (%p155) target = $region24
        $region23: #{tpu_custom_call.1} parent=15 // pred_region
          %s158 = sand.u32 %s69, 1
          %s159 = scalar_lea.sflag [#allocation6], %s158
          %s160 = sand.u32 %s69, 1
          %s161 = smul.addr %s160, 8
          %s162 = scalar_lea.vmem [#allocation5], %s161
          %164 = vsyncadd %s159, 0
          %s165 = sadd.s32 %s25, %s24
          %s166 = smul.addr %s165, 8
          %s167 = scalar_lea.hbm %s1, %s166
          %s169 = sshll.u32 %s167, 4
          %s170 = int_to_ptr.hbm [resolvable:$true] %s169
          %s171 = sshll.u32 %s162, 4
          %s172 = int_to_ptr.vmem [resolvable:$true] %s171
          %174 = dma.hbm_to_vmem [thread:$0]  %s170, 128, %s172, %s159
        $region24: #{tpu_custom_call.1} parent=15 // pred_fallthru
          _
      $region16: #{tpu_custom_call.1} parent=5 // pred_fallthru
        _
      %p175 = scmp.le.s32.totalorder 1, %s17
      %p176 = scmp.lt.s32.totalorder %s17, 3
      %p177 = pnand %p175, %p176
      %p178 = pneg %p177
      // Predicated region
      $region25: #{tpu_custom_call.1} parent=5 // pred_check
        _
      $region26: #{tpu_custom_call.1} parent=5 // pred_check_branch
        %180 = sbr.rel (%p177) target = $region28
      $region27: #{tpu_custom_call.1} parent=5 // pred_region
        %s181 = ssub.s32 %s17, 1
        %s182 = sand.u32 %s44, 1
        %s183 = scalar_lea.sflag [#allocation3], %s182
        %s184 = sand.u32 %s44, 1
        %s185 = smul.addr %s184, 32
        %s186 = scalar_lea.vmem [#allocation2], %s185
        // Predicated region
        $region29: #{tpu_custom_call.1} parent=27 // pred_check
          %p187 = pneg %p57
        $region30: #{tpu_custom_call.1} parent=27 // pred_check_branch
          %189 = sbr.rel (%p187) target = $region32
        $region31: #{tpu_custom_call.1} parent=27 // pred_region
          %191 = dma.done %s183, 512
        $region32: #{tpu_custom_call.1} parent=27 // pred_fallthru
          _
        %s192 = sand.u32 %s72, 1
        %s193 = scalar_lea.sflag [#allocation6], %s192
        %s194 = sand.u32 %s72, 1
        %s195 = smul.addr %s194, 8
        %s196 = scalar_lea.vmem [#allocation5], %s195
        // Predicated region
        $region33: #{tpu_custom_call.1} parent=27 // pred_check
          %p197 = pneg %p85
        $region34: #{tpu_custom_call.1} parent=27 // pred_check_branch
          %199 = sbr.rel (%p197) target = $region36
        $region35: #{tpu_custom_call.1} parent=27 // pred_region
          %201 = dma.done %s193, 128
        $region36: #{tpu_custom_call.1} parent=27 // pred_fallthru
          _
        %s202 = sand.u32 %s44, 1
        %s203 = scalar_lea.sflag [#allocation3], %s202
        %s204 = sand.u32 %s44, 1
        %s205 = smul.addr %s204, 32
        %s206 = scalar_lea.vmem [#allocation2], %s205
        %p207 = pneg %p57
        %p208 = pneg %p54
        %s209 = sand.u32 %s72, 1
        %s210 = scalar_lea.sflag [#allocation6], %s209
        %s211 = sand.u32 %s72, 1
        %s212 = smul.addr %s211, 8
        %s213 = scalar_lea.vmem [#allocation5], %s212
        %p214 = pneg %p85
        %p215 = pneg %p82
        %p216 = pneg %p113
        %p217 = pneg %p110
        %s218 = sand.u32 %s100, 1
        %s219 = scalar_lea.sflag [#allocation4], %s218
        %s220 = sand.u32 %s100, 1
        %s221 = smul.addr %s220, 32
        %s222 = scalar_lea.vmem [#allocation7], %s221
        %v223 = vlaneseq
        %v224 = vshrl.u32 %v223, 7
        %v225 = vlaneseq
        %v226 = vand.u32 %v225, 127
        %s227 = smul.u32 %s27, 8
        %v228 = vstv %s227
        %v229 = vadd.s32 %v228, %v224
        %v230 = vmul.u32 %v229, 128
        %v231 = vadd.s32 %v230, %v226
        %vm232 = vcmp.lt.s32.totalorder %v231, 256
        %v233 = vld [vmem:[%s196] sm:$0xff]
        %s234 = scalar_lea.vmem %s186, 8 [#allocation2]
        %v235 = vld [vmem:[%s234] sm:$0xff]
        %v236 = vld [vmem:[%s186] sm:$0xff]
        %v237 = vsub.f32 %v236, %v235
        %v238 = vsel %vm232, %v237, 0.0
        %v239 = vmul.f32 %v238, 1.442695
        %v240 = vpow.pop %v239
        %v241 = vadd.f32 %v240, 1.0
        %s242 = scalar_lea.vmem %s186, 16 [#allocation2]
        %v243 = vld [vmem:[%s242] sm:$0xff]
        %v244 = vsub.f32 %v243, %v235
        %v245 = vsel %vm232, %v244, 0.0
        %v246 = vmul.f32 %v245, 1.442695
        %v247 = vpow.pop %v246
        %v248 = vadd.f32 %v241, %v247
        %s249 = scalar_lea.vmem %s186, 24 [#allocation2]
        %v250 = vld [vmem:[%s249] sm:$0xff]
        %v251 = vsub.f32 %v250, %v235
        %v252 = vsel %vm232, %v251, 0.0
        %v253 = vmul.f32 %v252, 1.442695
        %v254 = vpow.pop %v253
        %v255 = vadd.f32 %v248, %v254
        %v256 = vrcp.pop %v255
        %v257 = vmul.f32 %v255, %v256
        %v258 = vsub.f32 1.0, %v257
        %v259 = vmul.f32 %v256, %v258
        %v260 = vadd.f32 %v256, %v259
        %vm261 = vweird.f32 %v255
        %vm262 = vweird.f32 %v256
        %vm263 = vmor %vm261, %vm262
        %v264 = vsel %vm263, %v256, %v260
        %v265 = vand.u32 2147483647, %v255
        %vm266 = vcmp.eq.f32.partialorder %v265, 8.507059e+37
        %v267 = vand.u32 %v255, 2147483648
        %v268 = vor.u32 1.1754944e-38, %v267
        %v269 = vsel %vm266, %v268, %v264
        %v270 = vmul.f32 1.0, %v269
        %vm271 = vcmp.eq.f32.partialorder %v233, 1.0
        %v272 = vsel %vm271, 1, 0
        %v273 = vcvt.s32.f32 %v272
        %v274 = vsel %vm232, %v273, 0.0
        %v275 = vadd.f32 %v274, 0.0
        %276 = vst [vmem:[%s222] sm:$0xff] %v275
        %vm277 = vcmp.eq.f32.partialorder %v233, 0.0
        %v278 = vsel %vm277, 1, 0
        %v279 = vcvt.s32.f32 %v278
        %v280 = vsel %vm232, %v279, 0.0
        %v281 = vadd.f32 %v280, 0.0
        %s282 = scalar_lea.vmem %s222, 8 [#allocation7]
        %283 = vst [vmem:[%s282] sm:$0xff] %v281
        %v284 = vsel %vm232, %v233, 0.0
        %v285 = vsub.f32 3.5, %v270
        %v286 = vmax.f32 %v285, 0.0
        %v287 = vmul.f32 %v284, %v286
        %v288 = vadd.f32 %v287, 0.0
        %s289 = scalar_lea.vmem %s222, 16 [#allocation7]
        %290 = vst [vmem:[%s289] sm:$0xff] %v288
        %v291 = vsub.f32 1.0, %v233
        %v292 = vsel %vm232, %v291, 0.0
        %v293 = vmul.f32 %v292, %v270
        %v294 = vadd.f32 %v293, 0.0
        %s295 = scalar_lea.vmem %s222, 24 [#allocation7]
        %296 = vst [vmem:[%s295] sm:$0xff] %v294
        %s297 = sand.u32 %s100, 1
        %s298 = scalar_lea.sflag [#allocation4], %s297
        %s299 = sand.u32 %s100, 1
        %s300 = smul.addr %s299, 32
        %s301 = scalar_lea.vmem [#allocation7], %s300
        // Predicated region
        $region37: #{tpu_custom_call.1} parent=27 // pred_check
          %p302 = pneg %p110
        $region38: #{tpu_custom_call.1} parent=27 // pred_check_branch
          %304 = sbr.rel (%p302) target = $region40
        $region39: #{tpu_custom_call.1} parent=27 // pred_region
          %306 = vsyncadd %s298, 0
          %s307 = smul.addr %s27, 4
          %s308 = smul.addr %s26, 4
          %s309 = sadd.s32 %s307, %s308
          %s310 = smul.addr %s309, 8
          %s311 = scalar_lea.hbm %s2, %s310
          %s312 = sshll.u32 %s301, 4
          %s313 = int_to_ptr.vmem [resolvable:$true] %s312
          %s314 = sshll.u32 %s311, 4
          %s315 = int_to_ptr.hbm [resolvable:$true] %s314
          %320 = dma.vmem_to_hbm [thread:$0]  %s313, 512, %s315, %s298, 128, 128, 8
        $region40: #{tpu_custom_call.1} parent=27 // pred_fallthru
          _
      $region28: #{tpu_custom_call.1} parent=5 // pred_fallthru
        _
      %p321 = scmp.le.s32.totalorder 2, %s17
      // Predicated region
      $region41: #{tpu_custom_call.1} parent=5 // pred_check
        %p322 = pneg %p321
      $region42: #{tpu_custom_call.1} parent=5 // pred_check_branch
        %324 = sbr.rel (%p322) target = $region44
      $region43: #{tpu_custom_call.1} parent=5 // pred_region
        %s325 = ssub.s32 %s17, 2
        // Predicated region
        $region45: #{tpu_custom_call.1} parent=43 // pred_check
          %p326 = pneg %p116
        $region46: #{tpu_custom_call.1} parent=43 // pred_check_branch
          %328 = sbr.rel (%p326) target = $region48
        $region47: #{tpu_custom_call.1} parent=43 // pred_region
          %s329 = sand.u32 %s101, 1
          %s330 = scalar_lea.sflag [#allocation4], %s329
          %s331 = sand.u32 %s101, 1
          %s332 = smul.addr %s331, 32
          %s333 = scalar_lea.vmem [#allocation7], %s332
          %335 = dma.done %s330, 512
        $region48: #{tpu_custom_call.1} parent=43 // pred_fallthru
          _
      $region44: #{tpu_custom_call.1} parent=5 // pred_fallthru
        _
    $region6: #{tpu_custom_call.1} parent=1 // loop_footer
      %s21 = sadd.s32 1, %s17
    $region7: #{tpu_custom_call.1} parent=1 // loop_footer_branch
      %16 = sbr.rel target = $region3
    $region8: #{tpu_custom_call.1} parent=1 // loop_exit
      _
    %336 = vsyncpa [#allocation3], 1
    %s337 = scalar_lea.sflag [#allocation3], 1
    %338 = vsyncpa %s337, 1
    %339 = vsyncpa [#allocation6], 1
    %s340 = scalar_lea.sflag [#allocation6], 1
    %341 = vsyncpa %s340, 1
    %342 = vsyncpa [#allocation4], 1
    %s343 = scalar_lea.sflag [#allocation4], 1
    %344 = vsyncpa %s343, 1

</llo_original>
